<compile_context>
chip_gen: v7x
topology: tpu7x:2x2x1
jax: 0.10.0
libtpu: 0.0.40
codegen_flags: <defaults>
</compile_context>

<pallas_src>
import jax
import jax.numpy as jnp
from jax.experimental import pallas as pl
from jax.experimental.pallas import tpu as pltpu

F_IN, F_HID, F_OUT = 4, 10, 2        # Iris: 4 features -> 10 hidden -> 2 out
GROUP = 8                            # samples packed per kernel row
IN_W = GROUP * F_IN                  # 32
HID_W = GROUP * F_HID                # 80
OUT_W = GROUP * F_OUT                # 16


def _round_up(n, m):
    return ((n + m - 1) // m) * m


def _cdiv(a, b):
    return (a + b - 1) // b


def pack_params(w1, b1, w2, b2, alpha):
    """Build the 8-way block-diagonal weights used by the kernel.

    PyTorch layout inputs: w1[10,4], b1[10], w2[2,10], b2[2], alpha scalar.
    For a row holding 8 flattened samples [s0_f0..f3, s1_f0..f3, ...]:
       h_row = row @ W1big + b1big   (per-sample Linear(4->10))
       o_row = prelu(h_row) @ W2big + b2big
    """
    w1 = w1.astype(jnp.float32)
    b1 = b1.astype(jnp.float32)
    w2 = w2.astype(jnp.float32)
    b2 = b2.astype(jnp.float32)
    eye = jnp.eye(GROUP, dtype=jnp.float32)
    return {
        # raw params for the small-batch XLA fallback
        "w1": w1, "b1": b1, "w2": w2, "b2": b2,
        "alpha": jnp.asarray(alpha, jnp.float32).reshape((1,)),
        # block-diagonal packed params for the kernel
        "w1big": jnp.kron(eye, w1.T),                       # [32, 80]
        "b1big": jnp.tile(b1, GROUP).reshape(1, HID_W),     # [1, 80]
        "w2big": jnp.kron(eye, w2.T),                       # [80, 16]
        "b2big": jnp.tile(b2, GROUP).reshape(1, OUT_W),     # [1, 16]
    }


def _net_kernel(alpha_ref, w1_ref, b1_ref, w2_ref, b2_ref, x_ref, o_ref):
    # alpha_ref : SMEM f32[1]      shared PReLU slope
    # w1_ref    : [32, 80]  VMEM-resident (constant index_map)
    # b1_ref    : [1, 80]
    # w2_ref    : [80, 16]
    # b2_ref    : [1, 16]
    # x_ref     : [tile_rows, 32]  (8 samples per row, contiguous reshape of x)
    # o_ref     : [tile_rows, 16]  (reshapes back to [8*tile_rows, 2] for free)
    alpha = alpha_ref[0]
    x = x_ref[...]
    h = jnp.dot(x, w1_ref[...], preferred_element_type=jnp.float32) + b1_ref[...]
    h = jnp.where(h >= 0, h, alpha * h)                     # PReLU, shared alpha
    o_ref[...] = (jnp.dot(h, w2_ref[...], preferred_element_type=jnp.float32)
                  + b2_ref[...]).astype(o_ref.dtype)


def _jnp_forward(x, p):
    """Plain XLA path for small batches (pallas launch not worth it)."""
    h = x @ p["w1"].T + p["b1"]
    h = jnp.where(h >= 0, h, p["alpha"][0] * h)
    return h @ p["w2"].T + p["b2"]


def net_forward(x, params, decode=True, *, block_rows=8192, min_pallas_batch=16384):
    """Forward pass of `Net`. `decode` is identity in the reference module.

    x          : [B, 4] float32
    params     : dict from pack_params()
    block_rows : kernel tile size in row-groups (1 row = 8 samples)
    """
    x = x.astype(jnp.float32)
    B = x.shape[0]

    if B < min_pallas_batch:
        out = _jnp_forward(x, params)
    else:
        # Pad only when B is not a multiple of the 8-sample group (rare).
        B_pad = _round_up(B, GROUP)
        xg = x if B_pad == B else jnp.pad(x, ((0, B_pad - B), (0, 0)))
        R = B_pad // GROUP
        x2d = xg.reshape(R, IN_W)                 # contiguous reshape, no copy

        # Keep >= 2 grid steps so both v7x TensorCores get work; tile rows are
        # a multiple of 8 (sublane constraint).  Ragged last block handled by
        # Pallas (OOB reads ignored, OOB writes dropped) -> no row padding.
        tbr = min(block_rows, max(GROUP, _round_up(_cdiv(R, 2), GROUP)))
        grid = (_cdiv(R, tbr),)

        out2d = pl.pallas_call(
            _net_kernel,
            out_shape=jax.ShapeDtypeStruct((R, OUT_W), jnp.float32),
            grid=grid,
            in_specs=[
                # PReLU alpha: scalar in SMEM.
                pl.BlockSpec(memory_space=pltpu.SMEM),
                # Packed weights / biases: one DMA, VMEM-resident across steps.
                pl.BlockSpec((IN_W, HID_W), lambda i: (0, 0)),
                pl.BlockSpec((1, HID_W), lambda i: (0, 0)),
                pl.BlockSpec((HID_W, OUT_W), lambda i: (0, 0)),
                pl.BlockSpec((1, OUT_W), lambda i: (0, 0)),
                # x row-group tile: contiguous, no wrapper transpose.
                pl.BlockSpec((tbr, IN_W), lambda i: (i, 0)),
            ],
            out_specs=pl.BlockSpec((tbr, OUT_W), lambda i: (i, 0)),
            compiler_params=pltpu.CompilerParams(
                dimension_semantics=("parallel",),          # v7x megacore split
                vmem_limit_bytes=32 * 1024 * 1024,
            ),
        )(params["alpha"], params["w1big"], params["b1big"],
          params["w2big"], params["b2big"], x2d)

        out = out2d.reshape(B_pad, F_OUT)         # free reshape back to [B_pad, 2]
        if B_pad != B:
            out = out[:B]                         # drop padded samples

    if decode:
        pass  # decode(x) = x (identity)
    return out


def init_params(key):
    """PyTorch-layout params: nn.Linear default init and nn.PReLU default 0.25."""
    k1, k2, k3, k4 = jax.random.split(key, 4)
    bound1 = 1.0 / jnp.sqrt(jnp.float32(F_IN))
    bound2 = 1.0 / jnp.sqrt(jnp.float32(F_HID))
    w1 = jax.random.uniform(k1, (F_HID, F_IN), jnp.float32, -bound1, bound1)
    b1 = jax.random.uniform(k2, (F_HID,), jnp.float32, -bound1, bound1)
    w2 = jax.random.uniform(k3, (F_OUT, F_HID), jnp.float32, -bound2, bound2)
    b2 = jax.random.uniform(k4, (F_OUT,), jnp.float32, -bound2, bound2)
    alpha = jnp.float32(0.25)
    return w1, b1, w2, b2, alpha


def reference_forward(x, w1, b1, w2, b2, alpha):
    h = x @ w1.T + b1
    h = jnp.where(h >= 0, h, alpha * h)
    return h @ w2.T + b2


if __name__ == "__main__":
    key = jax.random.PRNGKey(0)
    kx1, kx2, kx3, kp = jax.random.split(key, 4)

    w1, b1, w2, b2, alpha = init_params(kp)
    params = pack_params(w1, b1, w2, b2, alpha)

    # --- Pallas path (forced): B=256 -> 32 row-groups, 4 grid steps of 8 rows.
    B_big = 256
    x_big = jax.random.normal(kx1, (B_big, F_IN), jnp.float32)
    out_big = jax.block_until_ready(
        net_forward(x_big, params, decode=True, block_rows=8, min_pallas_batch=1))
    ref_big = reference_forward(x_big, w1, b1, w2, b2, alpha)
    assert out_big.shape == (B_big, F_OUT)
    assert jnp.allclose(out_big, ref_big, atol=1e-5, rtol=1e-5), "pallas mismatch"

    # --- Pallas path, batch not a multiple of 8 and ragged last grid block.
    B_ragged = 300       # pads to 304 -> 38 rows; tile 16 rows -> grid 3 (partial last)
    x_ragged = jax.random.normal(kx2, (B_ragged, F_IN), jnp.float32)
    out_ragged = jax.block_until_ready(
        net_forward(x_ragged, params, decode=False, block_rows=16, min_pallas_batch=1))
    ref_ragged = reference_forward(x_ragged, w1, b1, w2, b2, alpha)
    assert out_ragged.shape == (B_ragged, F_OUT)
    assert jnp.allclose(out_ragged, ref_ragged, atol=1e-5, rtol=1e-5), "ragged mismatch"

    # --- Tiny batch dispatches to the plain-XLA fallback (no pallas launch).
    B_small = 8
    x_small = jax.random.normal(kx3, (B_small, F_IN), jnp.float32)
    out_small = jax.block_until_ready(net_forward(x_small, params, decode=True))
    ref_small = reference_forward(x_small, w1, b1, w2, b2, alpha)
    assert jnp.allclose(out_small, ref_small, atol=1e-5, rtol=1e-5), "fallback mismatch"

    print("KERNEL_OK")
</pallas_src>

<mosaic_0001>
module attributes {stable_mosaic.version = 11 : i64} {
  func.func @_net_kernel(%arg0: i32, %arg1: memref<1xf32, #tpu.memory_space<smem>>, %arg2: memref<32x80xf32, #tpu.memory_space<vmem>>, %arg3: memref<1x80xf32, #tpu.memory_space<vmem>>, %arg4: memref<80x16xf32, #tpu.memory_space<vmem>>, %arg5: memref<1x16xf32, #tpu.memory_space<vmem>>, %arg6: memref<8x32xf32, #tpu.memory_space<vmem>>, %arg7: memref<8x16xf32, #tpu.memory_space<vmem>>) attributes {dimension_semantics = [#tpu.dimension_semantics<parallel>], iteration_bounds = array<i64: 4>, scalar_prefetch = 0 : i64, scratch_operands = 0 : i64, tpu.core_type = #tpu.core_type<tc>, window_params = [{transform_indices = @transform_0, window_bounds = array<i64: 1>}, {pipeline_mode = #tpu.pipeline_mode<synchronous>, transform_indices = @transform_1, window_bounds = array<i64: 32, 80>}, {pipeline_mode = #tpu.pipeline_mode<synchronous>, transform_indices = @transform_2, window_bounds = array<i64: 1, 80>}, {pipeline_mode = #tpu.pipeline_mode<synchronous>, transform_indices = @transform_3, window_bounds = array<i64: 80, 16>}, {pipeline_mode = #tpu.pipeline_mode<synchronous>, transform_indices = @transform_4, window_bounds = array<i64: 1, 16>}, {transform_indices = @transform_5, window_bounds = array<i64: 8, 32>}, {transform_indices = @transform_6, window_bounds = array<i64: 8, 16>}]} {
    %c0 = arith.constant 0 : index
    %0 = memref.load %arg1[%c0] : memref<1xf32, #tpu.memory_space<smem>>
    %c0_0 = arith.constant 0 : index
    %c0_1 = arith.constant 0 : index
    %1 = vector.load %arg6[%c0_0, %c0_1] : memref<8x32xf32, #tpu.memory_space<vmem>>, vector<8x32xf32>
    %c0_2 = arith.constant 0 : index
    %c0_3 = arith.constant 0 : index
    %2 = vector.load %arg2[%c0_2, %c0_3] : memref<32x80xf32, #tpu.memory_space<vmem>>, vector<32x80xf32>
    %cst = arith.constant dense<0.000000e+00> : vector<8x80xf32>
    %3 = tpu.matmul %1, %2, %cst {dimension_numbers = #tpu.dot_dimension_numbers<[1], [0], [0], [1], [0, 0, 1, 1], [], []>} : vector<8x32xf32>, vector<32x80xf32>, vector<8x80xf32> -> vector<8x80xf32>
    %c0_4 = arith.constant 0 : index
    %c0_5 = arith.constant 0 : index
    %4 = vector.load %arg3[%c0_4, %c0_5] : memref<1x80xf32, #tpu.memory_space<vmem>>, vector<1x80xf32>
    %5 = vector.broadcast %4 : vector<1x80xf32> to vector<8x80xf32>
    %6 = arith.addf %3, %5 : vector<8x80xf32>
    %cst_6 = arith.constant 0.000000e+00 : f32
    %7 = vector.broadcast %cst_6 : f32 to vector<8x80xf32>
    %8 = arith.cmpf oge, %6, %7 : vector<8x80xf32>
    %9 = vector.broadcast %0 : f32 to vector<8x80xf32>
    %10 = arith.mulf %9, %6 : vector<8x80xf32>
    %11 = arith.select %8, %6, %10 : vector<8x80xi1>, vector<8x80xf32>
    %c0_7 = arith.constant 0 : index
    %c0_8 = arith.constant 0 : index
    %12 = vector.load %arg4[%c0_7, %c0_8] : memref<80x16xf32, #tpu.memory_space<vmem>>, vector<80x16xf32>
    %cst_9 = arith.constant dense<0.000000e+00> : vector<8x16xf32>
    %13 = tpu.matmul %11, %12, %cst_9 {dimension_numbers = #tpu.dot_dimension_numbers<[1], [0], [0], [1], [0, 0, 1, 1], [], []>} : vector<8x80xf32>, vector<80x16xf32>, vector<8x16xf32> -> vector<8x16xf32>
    %c0_10 = arith.constant 0 : index
    %c0_11 = arith.constant 0 : index
    %14 = vector.load %arg5[%c0_10, %c0_11] : memref<1x16xf32, #tpu.memory_space<vmem>>, vector<1x16xf32>
    %15 = vector.broadcast %14 : vector<1x16xf32> to vector<8x16xf32>
    %16 = arith.addf %13, %15 : vector<8x16xf32>
    %c0_12 = arith.constant 0 : index
    %c0_13 = arith.constant 0 : index
    %17 = vector.load %arg7[%c0_12, %c0_13] : memref<8x16xf32, #tpu.memory_space<vmem>>, vector<8x16xf32>
    tpu.vector_store %arg7[%c0_12, %c0_13], %16 {strides = array<i32>} : memref<8x16xf32, #tpu.memory_space<vmem>>, vector<8x16xf32>,
    return
  }
  func.func @transform_0(%arg0: i32) -> i32 {
    %c0_i32 = arith.constant 0 : i32
    %c0_i32_0 = arith.constant 0 : i32
    return %c0_i32 : i32
  }
  func.func @transform_1(%arg0: i32) -> (i32, i32) {
    %c0_i32 = arith.constant 0 : i32
    %c0_i32_0 = arith.constant 0 : i32
    %c0_i32_1 = arith.constant 0 : i32
    return %c0_i32, %c0_i32_0 : i32, i32
  }
  func.func @transform_2(%arg0: i32) -> (i32, i32) {
    %c0_i32 = arith.constant 0 : i32
    %c0_i32_0 = arith.constant 0 : i32
    %c0_i32_1 = arith.constant 0 : i32
    return %c0_i32, %c0_i32_0 : i32, i32
  }
  func.func @transform_3(%arg0: i32) -> (i32, i32) {
    %c0_i32 = arith.constant 0 : i32
    %c0_i32_0 = arith.constant 0 : i32
    %c0_i32_1 = arith.constant 0 : i32
    return %c0_i32, %c0_i32_0 : i32, i32
  }
  func.func @transform_4(%arg0: i32) -> (i32, i32) {
    %c0_i32 = arith.constant 0 : i32
    %c0_i32_0 = arith.constant 0 : i32
    %c0_i32_1 = arith.constant 0 : i32
    return %c0_i32, %c0_i32_0 : i32, i32
  }
  func.func @transform_5(%arg0: i32) -> (i32, i32) {
    %c0_i32 = arith.constant 0 : i32
    %c0_i32_0 = arith.constant 0 : i32
    return %arg0, %c0_i32 : i32, i32
  }
  func.func @transform_6(%arg0: i32) -> (i32, i32) {
    %c0_i32 = arith.constant 0 : i32
    %c0_i32_0 = arith.constant 0 : i32
    return %arg0, %c0_i32 : i32, i32
  }
}

</mosaic_0001>

<llo_original>
// kernel: tpu_custom_call.1
$region0: #{tpu_custom_call.1}
  #allocation0 [shape = 'u32[]', space=smem, size = 0x4, offset = 0x4, fixed_abs, tag = 'smem constant byte address 0x4 - core index']
  #allocation1 [shape = 'u32[144,128]{1,0:T(1,128)}', space=vmem, size = 0x12000, scoped, tag = 'internal scratch']
  #allocation2 [shape = 'f32[1]{0:T(128)S(6)}', space=smem, size = 0x200, scoped, tag = 'scoped memory for tpu_custom_call.1']
  %s0 = inlined_call_operand.<no memory space> [shape: f32[1], index: 0, kind: input, shape index: {}]
  %s1 = inlined_call_operand.vmem [shape: f32[32,80], index: 1, kind: input, shape index: {}]
  %s2 = inlined_call_operand.vmem [shape: f32[1,80], index: 2, kind: input, shape index: {}]
  %s3 = inlined_call_operand.vmem [shape: f32[80,16], index: 3, kind: input, shape index: {}]
  %s4 = inlined_call_operand.vmem [shape: f32[1,16], index: 4, kind: input, shape index: {}]
  %s5 = inlined_call_operand.vmem [shape: f32[32,32], index: 5, kind: input, shape index: {}]
  %s6 = inlined_call_operand.vmem [shape: f32[32,16], index: 6, kind: output, shape index: {}]
  %s7 = sld [smem:[#allocation0]]
  $region57: #{tpu_custom_call.1} parent=0
    _
  %s9 = ssub.s32 1, %s7
  %s10 = scalar_select 0, %s9, %s7
  %11 = sst [smem:[#allocation2]] %s0
  loop: start=0, step=1, limit=6
  $region2: #{tpu_custom_call.1} parent=0 // loop_pre_header
    _
  $region3: #{tpu_custom_call.1} parent=0 // loop_header
    %s13 = sphi 0, %s17
    %p14 = scmp.ge.s32.totalorder %s13, 6
    %s21 = sphi 0, %s21
    %s23 = sphi 0, %s21
    %s24 = sphi 0, %s23
    %s38 = sphi 0, %s24
    %s42 = sphi 0, %s42
    %s44 = sphi 0, %s42
    %s45 = sphi 0, %s44
    %s59 = sphi 0, %s45
    %s63 = sphi 0, %s63
    %s65 = sphi 0, %s63
    %s66 = sphi 0, %s65
    %s80 = sphi 0, %s66
    %s84 = sphi 0, %s84
    %s86 = sphi 0, %s84
    %s87 = sphi 0, %s86
    %s101 = sphi 0, %s87
    %s105 = sphi 0, %s105
    %s107 = sphi 0, %s105
    %s108 = sphi 0, %s107
    %s122 = sphi 0, %s108
    %s128 = sphi 0, %s130
    %s131 = sphi 0, %s128
    %s132 = sphi 0, %s131
    %s148 = sphi 0, %s132
    %s154 = sphi 0, %s156
    %s157 = sphi 0, %s154
    %s158 = sphi 0, %s157
    %s174 = sphi 0, %s158
  $region4: #{tpu_custom_call.1} parent=0 // loop_header_branch
    %16 = sbr.rel (%p14) target = $region8
  $region5: #{tpu_custom_call.1} parent=0 // loop_body
    %s18 = ssub.s32 %s13, 1
    %s19 = ssub.s32 %s13, 2
    %s20 = sadd.s32 %s13, 1
    %s22 = sadd.s32 %s21, 1
    %p25 = scmp.eq.s32.totalorder %s13, 3
    %p26 = scmp.ne.s32.totalorder %s21, %s23
    %p27 = scmp.eq.s32.totalorder %s13, 0
    %p28 = por %p26, %p27
    %p29 = scmp.ne.s32.totalorder %s21, %s23
    %p30 = scmp.eq.s32.totalorder %s18, 3
    %p31 = por %p29, %p30
    %p32 = scmp.ne.s32.totalorder %s23, %s24
    %p33 = scmp.eq.s32.totalorder %s18, 0
    %p34 = por %p32, %p33
    %p35 = scmp.ne.s32.totalorder %s23, %s24
    %p36 = scmp.eq.s32.totalorder %s19, 3
    %p37 = por %p35, %p36
    %p39 = scmp.ne.s32.totalorder %s24, %s38
    %p40 = scmp.eq.s32.totalorder %s19, 0
    %p41 = por %p39, %p40
    %s43 = sadd.s32 %s42, 1
    %p46 = scmp.eq.s32.totalorder %s13, 3
    %p47 = scmp.ne.s32.totalorder %s42, %s44
    %p48 = scmp.eq.s32.totalorder %s13, 0
    %p49 = por %p47, %p48
    %p50 = scmp.ne.s32.totalorder %s42, %s44
    %p51 = scmp.eq.s32.totalorder %s18, 3
    %p52 = por %p50, %p51
    %p53 = scmp.ne.s32.totalorder %s44, %s45
    %p54 = scmp.eq.s32.totalorder %s18, 0
    %p55 = por %p53, %p54
    %p56 = scmp.ne.s32.totalorder %s44, %s45
    %p57 = scmp.eq.s32.totalorder %s19, 3
    %p58 = por %p56, %p57
    %p60 = scmp.ne.s32.totalorder %s45, %s59
    %p61 = scmp.eq.s32.totalorder %s19, 0
    %p62 = por %p60, %p61
    %s64 = sadd.s32 %s63, 1
    %p67 = scmp.eq.s32.totalorder %s13, 3
    %p68 = scmp.ne.s32.totalorder %s63, %s65
    %p69 = scmp.eq.s32.totalorder %s13, 0
    %p70 = por %p68, %p69
    %p71 = scmp.ne.s32.totalorder %s63, %s65
    %p72 = scmp.eq.s32.totalorder %s18, 3
    %p73 = por %p71, %p72
    %p74 = scmp.ne.s32.totalorder %s65, %s66
    %p75 = scmp.eq.s32.totalorder %s18, 0
    %p76 = por %p74, %p75
    %p77 = scmp.ne.s32.totalorder %s65, %s66
    %p78 = scmp.eq.s32.totalorder %s19, 3
    %p79 = por %p77, %p78
    %p81 = scmp.ne.s32.totalorder %s66, %s80
    %p82 = scmp.eq.s32.totalorder %s19, 0
    %p83 = por %p81, %p82
    %s85 = sadd.s32 %s84, 1
    %p88 = scmp.eq.s32.totalorder %s13, 3
    %p89 = scmp.ne.s32.totalorder %s84, %s86
    %p90 = scmp.eq.s32.totalorder %s13, 0
    %p91 = por %p89, %p90
    %p92 = scmp.ne.s32.totalorder %s84, %s86
    %p93 = scmp.eq.s32.totalorder %s18, 3
    %p94 = por %p92, %p93
    %p95 = scmp.ne.s32.totalorder %s86, %s87
    %p96 = scmp.eq.s32.totalorder %s18, 0
    %p97 = por %p95, %p96
    %p98 = scmp.ne.s32.totalorder %s86, %s87
    %p99 = scmp.eq.s32.totalorder %s19, 3
    %p100 = por %p98, %p99
    %p102 = scmp.ne.s32.totalorder %s87, %s101
    %p103 = scmp.eq.s32.totalorder %s19, 0
    %p104 = por %p102, %p103
    %s106 = sadd.s32 %s105, 1
    %p109 = scmp.eq.s32.totalorder %s13, 3
    %p110 = scmp.ne.s32.totalorder %s105, %s107
    %p111 = scmp.eq.s32.totalorder %s13, 0
    %p112 = por %p110, %p111
    %p113 = scmp.ne.s32.totalorder %s105, %s107
    %p114 = scmp.eq.s32.totalorder %s18, 3
    %p115 = por %p113, %p114
    %p116 = scmp.ne.s32.totalorder %s107, %s108
    %p117 = scmp.eq.s32.totalorder %s18, 0
    %p118 = por %p116, %p117
    %p119 = scmp.ne.s32.totalorder %s107, %s108
    %p120 = scmp.eq.s32.totalorder %s19, 3
    %p121 = por %p119, %p120
    %p123 = scmp.ne.s32.totalorder %s108, %s122
    %p124 = scmp.eq.s32.totalorder %s19, 0
    %p125 = por %p123, %p124
    %s126 = ssub.s32 %s13, %s20
    %p127 = scmp.eq.s32.totalorder %s126, 0
    %s129 = sadd.s32 %s128, 1
    %s130 = scalar_select %p127, %s128, %s129
    %p133 = pneg %p127
    %p134 = scmp.eq.s32.totalorder %s13, 3
    %p135 = por %p133, %p134
    %p136 = scmp.ne.s32.totalorder %s128, %s131
    %p137 = scmp.eq.s32.totalorder %s13, 0
    %p138 = por %p136, %p137
    %p139 = scmp.ne.s32.totalorder %s128, %s131
    %p140 = scmp.eq.s32.totalorder %s18, 3
    %p141 = por %p139, %p140
    %p142 = scmp.ne.s32.totalorder %s131, %s132
    %p143 = scmp.eq.s32.totalorder %s18, 0
    %p144 = por %p142, %p143
    %p145 = scmp.ne.s32.totalorder %s131, %s132
    %p146 = scmp.eq.s32.totalorder %s19, 3
    %p147 = por %p145, %p146
    %p149 = scmp.ne.s32.totalorder %s132, %s148
    %p150 = scmp.eq.s32.totalorder %s19, 0
    %p151 = por %p149, %p150
    %s152 = ssub.s32 %s13, %s20
    %p153 = scmp.eq.s32.totalorder %s152, 0
    %s155 = sadd.s32 %s154, 1
    %s156 = scalar_select %p153, %s154, %s155
    %p159 = pneg %p153
    %p160 = scmp.eq.s32.totalorder %s13, 3
    %p161 = por %p159, %p160
    %p162 = scmp.ne.s32.totalorder %s154, %s157
    %p163 = scmp.eq.s32.totalorder %s13, 0
    %p164 = por %p162, %p163
    %p165 = scmp.ne.s32.totalorder %s154, %s157
    %p166 = scmp.eq.s32.totalorder %s18, 3
    %p167 = por %p165, %p166
    %p168 = scmp.ne.s32.totalorder %s157, %s158
    %p169 = scmp.eq.s32.totalorder %s18, 0
    %p170 = por %p168, %p169
    %p171 = scmp.ne.s32.totalorder %s157, %s158
    %p172 = scmp.eq.s32.totalorder %s19, 3
    %p173 = por %p171, %p172
    %p175 = scmp.ne.s32.totalorder %s158, %s174
    %p176 = scmp.eq.s32.totalorder %s19, 0
    %p177 = por %p175, %p176
    %p178 = scmp.le.s32.totalorder 1, %s13
    %p179 = scmp.lt.s32.totalorder %s13, 5
    %p180 = pnand %p178, %p179
    %p181 = pneg %p180
    // Predicated region
    $region9: #{tpu_custom_call.1} parent=5 // pred_check
      _
    $region10: #{tpu_custom_call.1} parent=5 // pred_check_branch
      %183 = sbr.rel (%p180) target = $region12
    $region11: #{tpu_custom_call.1} parent=5 // pred_region
      %s184 = ssub.s32 %s13, 1
      // Predicated region
      $region13: #{tpu_custom_call.1} parent=11 // pred_check
        %p185 = pneg %p34
      $region14: #{tpu_custom_call.1} parent=11 // pred_check_branch
        %187 = sbr.rel (%p185) target = $region16
      $region15: #{tpu_custom_call.1} parent=11 // pred_region
        _
      $region16: #{tpu_custom_call.1} parent=11 // pred_fallthru
        _
      // Predicated region
      $region17: #{tpu_custom_call.1} parent=11 // pred_check
        %p188 = pneg %p55
      $region18: #{tpu_custom_call.1} parent=11 // pred_check_branch
        %190 = sbr.rel (%p188) target = $region20
      $region19: #{tpu_custom_call.1} parent=11 // pred_region
        _
      $region20: #{tpu_custom_call.1} parent=11 // pred_fallthru
        _
      // Predicated region
      $region21: #{tpu_custom_call.1} parent=11 // pred_check
        %p191 = pneg %p76
      $region22: #{tpu_custom_call.1} parent=11 // pred_check_branch
        %193 = sbr.rel (%p191) target = $region24
      $region23: #{tpu_custom_call.1} parent=11 // pred_region
        _
      $region24: #{tpu_custom_call.1} parent=11 // pred_fallthru
        _
      // Predicated region
      $region25: #{tpu_custom_call.1} parent=11 // pred_check
        %p194 = pneg %p97
      $region26: #{tpu_custom_call.1} parent=11 // pred_check_branch
        %196 = sbr.rel (%p194) target = $region28
      $region27: #{tpu_custom_call.1} parent=11 // pred_region
        _
      $region28: #{tpu_custom_call.1} parent=11 // pred_fallthru
        _
      // Predicated region
      $region29: #{tpu_custom_call.1} parent=11 // pred_check
        %p197 = pneg %p118
      $region30: #{tpu_custom_call.1} parent=11 // pred_check_branch
        %199 = sbr.rel (%p197) target = $region32
      $region31: #{tpu_custom_call.1} parent=11 // pred_region
        _
      $region32: #{tpu_custom_call.1} parent=11 // pred_fallthru
        _
    $region12: #{tpu_custom_call.1} parent=5 // pred_fallthru
      _
    %p200 = scmp.lt.s32.totalorder %s13, 4
    // Predicated region
    $region33: #{tpu_custom_call.1} parent=5 // pred_check
      %p201 = pneg %p200
    $region34: #{tpu_custom_call.1} parent=5 // pred_check_branch
      %203 = sbr.rel (%p201) target = $region36
    $region35: #{tpu_custom_call.1} parent=5 // pred_region
      // Predicated region
      $region37: #{tpu_custom_call.1} parent=35 // pred_check
        %p204 = pneg %p138
      $region38: #{tpu_custom_call.1} parent=35 // pred_check_branch
        %206 = sbr.rel (%p204) target = $region40
      $region39: #{tpu_custom_call.1} parent=35 // pred_region
        %p207 = scmp.lt.s32.totalorder %s13, 3
        %s208 = scalar_select %p207, %s13, 3
        %s209 = smul.addr %s208, 8
        %s210 = scalar_lea.vmem %s5, %s209
      $region40: #{tpu_custom_call.1} parent=35 // pred_fallthru
        _
    $region36: #{tpu_custom_call.1} parent=5 // pred_fallthru
      _
    %p211 = scmp.le.s32.totalorder 1, %s13
    %p212 = scmp.lt.s32.totalorder %s13, 5
    %p213 = pnand %p211, %p212
    %p214 = pneg %p213
    // Predicated region
    $region41: #{tpu_custom_call.1} parent=5 // pred_check
      _
    $region42: #{tpu_custom_call.1} parent=5 // pred_check_branch
      %216 = sbr.rel (%p213) target = $region44
    $region43: #{tpu_custom_call.1} parent=5 // pred_region
      %s217 = ssub.s32 %s13, 1
      %p218 = pneg %p34
      %p219 = pneg %p31
      %p220 = pneg %p55
      %p221 = pneg %p52
      %p222 = pneg %p76
      %p223 = pneg %p73
      %p224 = pneg %p97
      %p225 = pneg %p94
      %p226 = pneg %p118
      %p227 = pneg %p115
      %p228 = scmp.lt.s32.totalorder %s18, 3
      %s229 = scalar_select %p228, %s18, 3
      %s230 = smul.addr %s229, 8
      %s231 = scalar_lea.vmem %s5, %s230
      %p232 = pneg %p144
      %p233 = pneg %p141
      %p234 = pneg %p170
      %p235 = pneg %p167
      %p236 = scmp.lt.s32.totalorder %s18, 3
      %s237 = scalar_select %p236, %s18, 3
      %s238 = smul.addr %s237, 8
      %s239 = scalar_lea.vmem %s6, %s238
      %p240 = scmp.lt.s32.totalorder %s18, 3
      %s241 = scalar_select %p240, %s18, 3
      %s242 = smul.addr %s241, 8
      %s243 = scalar_lea.vmem %s5, %s242
      %p244 = scmp.lt.s32.totalorder %s18, 3
      %s245 = scalar_select %p244, %s18, 3
      %s246 = smul.addr %s245, 8
      %s247 = scalar_lea.vmem %s6, %s246
      %s248 = sld [smem:[#allocation2]]
      %v249 = vld [vmem:[%s243] sm:$0xff]
      %v250 = vld [vmem:[%s1] sm:$0xff]
      %v251 = vld [vmem:[%s1 + $0x8] sm:$0xff]
      %v252 = vld [vmem:[%s1 + $0x10] sm:$0xff]
      %v253 = vld [vmem:[%s1 + $0x18] sm:$0xff]
      %v254 = vld [vmem:[%s2] sm:$0x1]
      %v256 = vlaneseq
      %v257 = vshrl.u32 %v256, 7
      %v258 = vsub.s32 0, %v257
      %v259 = vrot.slane %v254, %v258
      %vm261 = vcmask 261120
      %v263 = vsel %vm261, %v249, 0
      %265 = vmatprep.subr.mxu0 0.0
      %266 = vmatpush1.msra.mxu0 %v250
      %267 = vmatprep.subr.mxu0 0.0
      %268 = vmatpush1.msra.mxu0 %v251
      %269 = vmatprep.subr.mxu0 0.0
      %270 = vmatpush1.msra.mxu0 %v252
      %271 = vmatprep.subr.mxu0 0.0
      %272 = vmatpush1.msra.mxu0 %v253
      %273 = vmatprep.subr.mxu0 0.0
      %274 = vmatpush1.msra.mxu0 0.0
      %275 = vmatprep.subr.mxu0 0.0
      %276 = vmatpush1.msra.mxu0 0.0
      %277 = vmatprep.subr.mxu0 0.0
      %278 = vmatpush1.msra.mxu0 0.0
      %279 = vmatprep.subr.mxu0 0.0
      %280 = vmatpush1.msra.mxu0 0.0
      %281 = vmatprep.subr.mxu0 0.0
      %282 = vmatpush1.msra.mxu0 0.0
      %283 = vmatprep.subr.mxu0 0.0
      %284 = vmatpush1.msra.mxu0 0.0
      %285 = vmatprep.subr.mxu0 0.0
      %286 = vmatpush1.msra.mxu0 0.0
      %287 = vmatprep.subr.mxu0 0.0
      %288 = vmatpush1.msra.mxu0 0.0
      %289 = vmatprep.subr.mxu0 0.0
      %290 = vmatpush1.msra.mxu0 0.0
      %291 = vmatprep.subr.mxu0 0.0
      %292 = vmatpush1.msra.mxu0 0.0
      %293 = vmatprep.subr.mxu0 0.0
      %294 = vmatpush1.msra.mxu0 0.0
      %295 = vmatprep.subr.mxu0 0.0
      %296 = vmatpush1.msra.mxu0 0.0
      %297 = vmatprep.subr.mxu0 0.0
      %298 = vmatpush1.msra.mxu0 0.0
      %299 = vmatprep.subr.mxu0 0.0
      %300 = vmatpush1.msra.mxu0 0.0
      %301 = vmatprep.subr.mxu0 0.0
      %302 = vmatpush1.msra.mxu0 0.0
      %303 = vmatprep.subr.mxu0 0.0
      %304 = vmatpush1.msra.mxu0 0.0
      %305 = vmatprep.subr.mxu0 0.0
      %306 = vmatpush1.msra.mxu0 0.0
      %307 = vmatprep.subr.mxu0 0.0
      %308 = vmatpush1.msra.mxu0 0.0
      %309 = vmatprep.subr.mxu0 0.0
      %310 = vmatpush1.msra.mxu0 0.0
      %311 = vmatprep.subr.mxu0 0.0
      %312 = vmatpush1.msra.mxu0 0.0
      %313 = vmatprep.subr.mxu0 0.0
      %314 = vmatpush1.msra.mxu0 0.0
      %315 = vmatprep.subr.mxu0 0.0
      %316 = vmatpush1.msra.mxu0 0.0
      %317 = vmatprep.subr.mxu0 0.0
      %318 = vmatpush1.msra.mxu0 0.0
      %319 = vmatprep.subr.mxu0 0.0
      %320 = vmatpush1.msra.mxu0 0.0
      %321 = vmatprep.subr.mxu0 0.0
      %322 = vmatpush1.msra.mxu0 0.0
      %323 = vmatprep.subr.mxu0 0.0
      %324 = vmatpush1.msra.mxu0 0.0
      %325 = vmatprep.subr.mxu0 0.0
      %326 = vmatpush1.msra.mxu0 0.0
      %327 = vmatprep.subr.mxu0 0.0
      %328 = vmatpush1.msra.mxu0 0.0
      %329 = vmatprep.mubr.f32.mxu0 0.0
      %330 = vmatmul.mubr.f32.gmra.mrb[0].mxu0 %v263
      %v331 = vpop.f32.mrb[0].mxu0
      %v332 = vadd.f32 %v259, %v331
      %v333 = vpop.f32.mrb[0].mxu0
      %334 = vdwg.mxu0
      %vm335 = vcmp.ge.f32.partialorder %v332, 0.0
      %v336 = vstv %s248
      %v337 = vmul.f32 %v336, %v332
      %v338 = vsel %vm335, %v332, %v337
      %v339 = vld [vmem:[%s3] sm:$0xff]
      %v340 = vld [vmem:[%s3 + $0x8] sm:$0xff]
      %v341 = vld [vmem:[%s3 + $0x10] sm:$0xff]
      %v342 = vld [vmem:[%s3 + $0x18] sm:$0xff]
      %v343 = vld [vmem:[%s3 + $0x20] sm:$0xff]
      %v344 = vld [vmem:[%s3 + $0x28] sm:$0xff]
      %v345 = vld [vmem:[%s3 + $0x30] sm:$0xff]
      %v346 = vld [vmem:[%s3 + $0x38] sm:$0xff]
      %v347 = vld [vmem:[%s3 + $0x40] sm:$0xff]
      %v348 = vld [vmem:[%s3 + $0x48] sm:$0xff]
      %v349 = vld [vmem:[%s4] sm:$0x1]
      %v351 = vlaneseq
      %v352 = vshrl.u32 %v351, 7
      %v353 = vsub.s32 0, %v352
      %v354 = vrot.slane %v349, %v353
      %vm356 = vcmask 654336
      %v358 = vsel %vm356, %v338, 0
      %360 = vmatprep.subr.mxu0 0.0
      %361 = vmatpush1.msra.mxu0 %v339
      %362 = vmatprep.subr.mxu0 0.0
      %363 = vmatpush1.msra.mxu0 %v340
      %364 = vmatprep.subr.mxu0 0.0
      %365 = vmatpush1.msra.mxu0 %v341
      %366 = vmatprep.subr.mxu0 0.0
      %367 = vmatpush1.msra.mxu0 %v342
      %368 = vmatprep.subr.mxu0 0.0
      %369 = vmatpush1.msra.mxu0 %v343
      %370 = vmatprep.subr.mxu0 0.0
      %371 = vmatpush1.msra.mxu0 %v344
      %372 = vmatprep.subr.mxu0 0.0
      %373 = vmatpush1.msra.mxu0 %v345
      %374 = vmatprep.subr.mxu0 0.0
      %375 = vmatpush1.msra.mxu0 %v346
      %376 = vmatprep.subr.mxu0 0.0
      %377 = vmatpush1.msra.mxu0 %v347
      %378 = vmatprep.subr.mxu0 0.0
      %379 = vmatpush1.msra.mxu0 %v348
      %380 = vmatprep.subr.mxu0 0.0
      %381 = vmatpush1.msra.mxu0 0.0
      %382 = vmatprep.subr.mxu0 0.0
      %383 = vmatpush1.msra.mxu0 0.0
      %384 = vmatprep.subr.mxu0 0.0
      %385 = vmatpush1.msra.mxu0 0.0
      %386 = vmatprep.subr.mxu0 0.0
      %387 = vmatpush1.msra.mxu0 0.0
      %388 = vmatprep.subr.mxu0 0.0
      %389 = vmatpush1.msra.mxu0 0.0
      %390 = vmatprep.subr.mxu0 0.0
      %391 = vmatpush1.msra.mxu0 0.0
      %392 = vmatprep.subr.mxu0 0.0
      %393 = vmatpush1.msra.mxu0 0.0
      %394 = vmatprep.subr.mxu0 0.0
      %395 = vmatpush1.msra.mxu0 0.0
      %396 = vmatprep.subr.mxu0 0.0
      %397 = vmatpush1.msra.mxu0 0.0
      %398 = vmatprep.subr.mxu0 0.0
      %399 = vmatpush1.msra.mxu0 0.0
      %400 = vmatprep.subr.mxu0 0.0
      %401 = vmatpush1.msra.mxu0 0.0
      %402 = vmatprep.subr.mxu0 0.0
      %403 = vmatpush1.msra.mxu0 0.0
      %404 = vmatprep.subr.mxu0 0.0
      %405 = vmatpush1.msra.mxu0 0.0
      %406 = vmatprep.subr.mxu0 0.0
      %407 = vmatpush1.msra.mxu0 0.0
      %408 = vmatprep.subr.mxu0 0.0
      %409 = vmatpush1.msra.mxu0 0.0
      %410 = vmatprep.subr.mxu0 0.0
      %411 = vmatpush1.msra.mxu0 0.0
      %412 = vmatprep.subr.mxu0 0.0
      %413 = vmatpush1.msra.mxu0 0.0
      %414 = vmatprep.subr.mxu0 0.0
      %415 = vmatpush1.msra.mxu0 0.0
      %416 = vmatprep.subr.mxu0 0.0
      %417 = vmatpush1.msra.mxu0 0.0
      %418 = vmatprep.subr.mxu0 0.0
      %419 = vmatpush1.msra.mxu0 0.0
      %420 = vmatprep.subr.mxu0 0.0
      %421 = vmatpush1.msra.mxu0 0.0
      %422 = vmatprep.subr.mxu0 0.0
      %423 = vmatpush1.msra.mxu0 0.0
      %424 = vmatprep.mubr.f32.mxu0 0.0
      %425 = vmatmul.mubr.f32.gmra.mrb[0].mxu0 %v358
      %v426 = vpop.f32.mrb[0].mxu0
      %v427 = vadd.f32 %v354, %v426
      %v428 = vpop.f32.mrb[0].mxu0
      %429 = vdwg.mxu0
      %vm430 = vcmask 130048
      %431 = vst.msk [vmem:[%s247] sm:$0xff] %vm430, %v427
      %p432 = scmp.lt.s32.totalorder %s18, 3
      %s433 = scalar_select %p432, %s18, 3
      %s434 = smul.addr %s433, 8
      %s435 = scalar_lea.vmem %s6, %s434
      // Predicated region
      $region45: #{tpu_custom_call.1} parent=43 // pred_check
        %p436 = pneg %p167
      $region46: #{tpu_custom_call.1} parent=43 // pred_check_branch
        %438 = sbr.rel (%p436) target = $region48
      $region47: #{tpu_custom_call.1} parent=43 // pred_region
        _
      $region48: #{tpu_custom_call.1} parent=43 // pred_fallthru
        _
    $region44: #{tpu_custom_call.1} parent=5 // pred_fallthru
      _
    %p439 = scmp.le.s32.totalorder 2, %s13
    // Predicated region
    $region49: #{tpu_custom_call.1} parent=5 // pred_check
      %p440 = pneg %p439
    $region50: #{tpu_custom_call.1} parent=5 // pred_check_branch
      %442 = sbr.rel (%p440) target = $region52
    $region51: #{tpu_custom_call.1} parent=5 // pred_region
      %s443 = ssub.s32 %s13, 2
      // Predicated region
      $region53: #{tpu_custom_call.1} parent=51 // pred_check
        %p444 = pneg %p173
      $region54: #{tpu_custom_call.1} parent=51 // pred_check_branch
        %446 = sbr.rel (%p444) target = $region56
      $region55: #{tpu_custom_call.1} parent=51 // pred_region
        %p447 = scmp.lt.s32.totalorder %s19, 3
        %s448 = scalar_select %p447, %s19, 3
        %s449 = smul.addr %s448, 8
        %s450 = scalar_lea.vmem %s6, %s449
      $region56: #{tpu_custom_call.1} parent=51 // pred_fallthru
        _
    $region52: #{tpu_custom_call.1} parent=5 // pred_fallthru
      _
  $region6: #{tpu_custom_call.1} parent=0 // loop_footer
    %s17 = sadd.s32 1, %s13
  $region7: #{tpu_custom_call.1} parent=0 // loop_footer_branch
    %12 = sbr.rel target = $region3
  $region8: #{tpu_custom_call.1} parent=0 // loop_exit
    _

</llo_original>
